<compile_context>
chip_gen: v7x
topology: tpu7x:2x2x1
jax: 0.10.0
libtpu: 0.0.40
codegen_flags: <defaults>
</compile_context>

<pallas_src>
import jax
import jax.numpy as jnp
import numpy as np
from jax.experimental import pallas as pl
from jax.experimental.pallas import tpu as pltpu

_LANE = 128


# ----------------------------------------------------------------------------
# Shared in-kernel helpers
# ----------------------------------------------------------------------------
def _spatial_sum(x):
    """Sum a (C, T) tile over its lane (spatial) axis with f32 accumulation.

    f32 tiles: exact lane reduce.  Narrow tiles (bf16): MXU matvec against a ones column —
    bf16 is a native MXU operand with f32 accumulation, so this is exact for the stored data
    and avoids an eager full-tile up-cast of x (review: v6e/v7x bf16 handling).
    """
    if x.dtype == jnp.float32:
        return jnp.sum(x, axis=1, keepdims=True)                        # (C, 1) f32
    ones = jnp.ones((x.shape[1], 1), dtype=x.dtype)
    return jnp.dot(x, ones, preferred_element_type=jnp.float32)        # (C, 1) f32


def _cse_scale_from_mean(mean_col, w1_ref, b1_ref, w2_ref, b2_ref):
    """sigmoid(W2 @ relu(W1 @ mean + b1) + b2), all as tiny column matvecs on the MXU."""
    h = jnp.dot(w1_ref[...], mean_col, preferred_element_type=jnp.float32) + b1_ref[...]
    h = jnp.maximum(h, 0.0)                                             # (Cr, 1)
    s = jnp.dot(w2_ref[...], h, preferred_element_type=jnp.float32) + b2_ref[...]
    return jax.nn.sigmoid(s)                                            # (C, 1)


def _fused_gate(x, scale_col, wboth_ref, coord_row, sse_b, out_dtype):
    """out = x * (cse_scale + sigmoid(sse) + sigmoid(coord)) for one (C, T) tile."""
    # Both channel-reduction logits from ONE MXU matmul: (2, C) @ (C, T).
    w = wboth_ref[...].astype(x.dtype)
    logits = jnp.dot(w, x, preferred_element_type=jnp.float32)          # (2, T) f32
    gate_sp = (jax.nn.sigmoid(logits[0:1, :] + sse_b)
               + jax.nn.sigmoid(logits[1:2, :] + coord_row))            # (1, T) f32
    total = scale_col + gate_sp                                         # (C, T) f32 broadcast
    # Final multiply in the input dtype (no full-tile f32 up-cast of x).
    return (x * total.astype(x.dtype)).astype(out_dtype)


# ----------------------------------------------------------------------------
# Fused single-pass kernel: mean + fc + gate with the (C, HW) slab resident in VMEM
# ----------------------------------------------------------------------------
def _make_fused_kernel(hw_true):
    inv_hw = 1.0 / float(hw_true)

    def kernel(x_ref, w1_ref, b1_ref, w2_ref, b2_ref, wboth_ref, coord_ref, sseb_ref, o_ref):
        x = x_ref[0]                                                    # (C, HWp), native dtype
        mean = _spatial_sum(x) * inv_hw                                 # (C, 1) f32 (pad adds 0)
        scale_col = _cse_scale_from_mean(mean, w1_ref, b1_ref, w2_ref, b2_ref)
        o_ref[0] = _fused_gate(x, scale_col, wboth_ref, coord_ref[...], sseb_ref[0],
                               o_ref.dtype)

    return kernel


# ----------------------------------------------------------------------------
# Two-pass fallback.  Pass 1: per-(batch, channel) cSE scale (streamed spatial reduction).
# ----------------------------------------------------------------------------
def _make_scale_kernel(hw_true):
    inv_hw = 1.0 / float(hw_true)

    def kernel(x_ref, w1_ref, b1_ref, w2_ref, b2_ref, scale_ref, acc_ref):
        t = pl.program_id(1)

        @pl.when(t == 0)
        def _init():
            acc_ref[...] = jnp.zeros_like(acc_ref)

        acc_ref[...] += _spatial_sum(x_ref[0])                          # (C, 1) f32

        # NOTE: the output block index is constant over the "arbitrary" t axis, so the output
        # block stays resident in VMEM across the reduction and is only written here, in the
        # final step.  Do not reorder the grid or change dimension_semantics without revisiting.
        @pl.when(t == pl.num_programs(1) - 1)
        def _finalize():
            mean = acc_ref[...] * inv_hw
            scale_ref[0] = _cse_scale_from_mean(mean, w1_ref, b1_ref, w2_ref, b2_ref)

    return kernel


# ----------------------------------------------------------------------------
# Pass 2: fully parallel fused gate.
# ----------------------------------------------------------------------------
def _gate_kernel(x_ref, scale_ref, wboth_ref, coord_ref, sseb_ref, o_ref):
    x = x_ref[0]                                                        # (C, tHW), native dtype
    # scale is kept in (C, 1) column layout so no lane<->sublane relayout is needed here.
    o_ref[0] = _fused_gate(x, scale_ref[0], wboth_ref, coord_ref[...], sseb_ref[0],
                           o_ref.dtype)


# ----------------------------------------------------------------------------
# Wrapper
# ----------------------------------------------------------------------------
def channel_spatial_se_coord(x4d, raw, *, force_two_pass=False, max_tile_bytes=None):
    """x4d: (B, C, H, W); raw: dict of PyTorch-layout parameters (see __main__)."""
    B, C, H, W = x4d.shape
    HW = H * W
    Cr = raw["W1"].shape[0]
    f32 = jnp.float32
    itemsize = jnp.dtype(x4d.dtype).itemsize

    # --- generation-aware VMEM budgets ---
    try:
        info = pltpu.get_tpu_info()
        vmem_cap = int(getattr(info, "vmem_capacity_bytes", 0) or (128 * 2**20))
    except Exception:  # interpret mode / older runtimes
        vmem_cap = 128 * 2**20
    small_vmem = vmem_cap <= 64 * 2**20            # v7x-class parts: 64 MiB per TensorCore
    if max_tile_bytes is None:
        max_tile_bytes = (4 * 2**20) if small_vmem else (8 * 2**20)
    budget_cap = (48 * 2**20) if small_vmem else (96 * 2**20)

    # --- pad the flattened spatial axis to a lane-dense multiple of 128 (no t_hw=HW fallback) ---
    HW_pad = ((HW + _LANE - 1) // _LANE) * _LANE
    x = x4d.reshape(B, C, HW)
    if HW_pad != HW:
        x = jnp.pad(x, ((0, 0), (0, 0), (0, HW_pad - HW)))  # zeros: sum unchanged, pad sliced off

    # --- parameter packing (plain-JAX glue, done once at trace time) ---
    w1 = raw["W1"].astype(f32)                                # (Cr, C)  fc1 weight (torch layout)
    b1 = raw["b1"].reshape(Cr, 1).astype(f32)                 # (Cr, 1)
    w2 = raw["W2"].astype(f32)                                # (C, Cr)  fc2 weight
    b2 = raw["b2"].reshape(C, 1).astype(f32)                  # (C, 1)
    w_both = jnp.stack([raw["sse_w"].reshape(C),
                        raw["coord_w"][:C].reshape(C)], axis=0).astype(f32)   # (2, C)
    sse_b = raw["sse_b"].reshape(1).astype(f32)               # SMEM scalar: sSE bias

    # CoordConv spatial-bias plane, hoisted out of the kernel (computed once).
    hh = jnp.arange(H, dtype=f32)[:, None] / max(H - 1, 1) * 2.0 - 1.0
    ww = jnp.arange(W, dtype=f32)[None, :] / max(W - 1, 1) * 2.0 - 1.0
    xx = jnp.broadcast_to(hh, (H, W))
    yy = jnp.broadcast_to(ww, (H, W))
    coord_plane = (raw["coord_w"][C] * xx + raw["coord_w"][C + 1] * yy
                   + raw["coord_b"]).reshape(1, HW).astype(f32)
    if HW_pad != HW:
        coord_plane = jnp.pad(coord_plane, ((0, 0), (0, HW_pad - HW)))

    param_bytes = 4 * (2 * C * Cr + Cr + 4 * C + HW_pad)

    # ---------------- fused single-pass path: x read from HBM exactly once ----------------
    full_blk = C * HW_pad
    fused_need = (4 * full_blk * itemsize        # in + out blocks, double buffered
                  + 3 * full_blk * 4             # f32 gate / product intermediates
                  + 2 * param_bytes + (2 << 20))
    use_fused = (not force_two_pass) and fused_need <= budget_cap

    if use_fused:
        out = pl.pallas_call(
            _make_fused_kernel(HW),
            out_shape=jax.ShapeDtypeStruct((B, C, HW_pad), x4d.dtype),
            grid=(B,),
            in_specs=[
                pl.BlockSpec((1, C, HW_pad), lambda b: (b, 0, 0)),     # x
                pl.BlockSpec((Cr, C), lambda b: (0, 0)),               # fc1 weight
                pl.BlockSpec((Cr, 1), lambda b: (0, 0)),               # fc1 bias
                pl.BlockSpec((C, Cr), lambda b: (0, 0)),               # fc2 weight
                pl.BlockSpec((C, 1), lambda b: (0, 0)),                # fc2 bias
                pl.BlockSpec((2, C), lambda b: (0, 0)),                # [sse_w; coord_w]
                pl.BlockSpec((1, HW_pad), lambda b: (0, 0)),           # coord bias plane
                pl.BlockSpec(memory_space=pltpu.MemorySpace.SMEM),     # sSE bias scalar
            ],
            out_specs=pl.BlockSpec((1, C, HW_pad), lambda b: (b, 0, 0)),
            compiler_params=pltpu.CompilerParams(
                # Batch axis parallel: >= 2 blocks whenever B >= 2 (v7x megacore).
                dimension_semantics=("parallel",),
                vmem_limit_bytes=int(min(budget_cap, max(16 << 20, fused_need)))),
        )(x, w1, b1, w2, b2, w_both, coord_plane, sse_b)
        return out[:, :, :HW].reshape(B, C, H, W)

    # ---------------- two-pass fallback for large feature maps ----------------
    # Lane tile: largest multiple-of-128 divisor of HW_pad whose (C, t) block fits the tile cap.
    divs = [m for m in range(_LANE, HW_pad + 1, _LANE) if HW_pad % m == 0]
    fits = [m for m in divs if C * m * itemsize <= max_tile_bytes]
    t_hw = max(fits) if fits else min(divs)
    n_hw = HW_pad // t_hw

    blk = C * t_hw
    p1_need = 2 * blk * itemsize + 2 * blk * 4 + 4 * C * 4 + 2 * param_bytes + (2 << 20)
    p2_need = (4 * blk * itemsize + 3 * blk * 4
               + 2 * (C * 4 + t_hw * 4) + 2 * param_bytes + (2 << 20))
    vmem_limit = int(min(budget_cap, max(16 << 20, max(p1_need, p2_need))))

    # ---- pass 1: per-channel cSE scale (kept in (B, C, 1) column layout so pass 2 can
    #      broadcast it against the (C, tHW) tile without any relayout; it is a tiny array) ----
    cse_scale = pl.pallas_call(
        _make_scale_kernel(HW),
        out_shape=jax.ShapeDtypeStruct((B, C, 1), f32),
        grid=(B, n_hw),
        in_specs=[
            pl.BlockSpec((1, C, t_hw), lambda b, t: (b, 0, t)),        # x
            pl.BlockSpec((Cr, C), lambda b, t: (0, 0)),                # fc1 weight
            pl.BlockSpec((Cr, 1), lambda b, t: (0, 0)),                # fc1 bias
            pl.BlockSpec((C, Cr), lambda b, t: (0, 0)),                # fc2 weight
            pl.BlockSpec((C, 1), lambda b, t: (0, 0)),                 # fc2 bias
        ],
        # Resident accumulator output: block index constant over the reduction axis t.
        out_specs=pl.BlockSpec((1, C, 1), lambda b, t: (b, 0, 0)),
        scratch_shapes=[pltpu.VMEM((C, 1), f32)],
        compiler_params=pltpu.CompilerParams(
            dimension_semantics=("parallel", "arbitrary"),
            vmem_limit_bytes=vmem_limit),
    )(x, w1, b1, w2, b2)

    # ---- pass 2: fully parallel fused gate ----
    out = pl.pallas_call(
        _gate_kernel,
        out_shape=jax.ShapeDtypeStruct((B, C, HW_pad), x4d.dtype),
        grid=(B, n_hw),
        in_specs=[
            pl.BlockSpec((1, C, t_hw), lambda b, t: (b, 0, t)),        # x
            pl.BlockSpec((1, C, 1), lambda b, t: (b, 0, 0)),           # cSE scale (pass 1)
            pl.BlockSpec((2, C), lambda b, t: (0, 0)),                 # [sse_w; coord_w]
            pl.BlockSpec((1, t_hw), lambda b, t: (0, t)),              # coord bias plane
            pl.BlockSpec(memory_space=pltpu.MemorySpace.SMEM),         # sSE bias scalar
        ],
        out_specs=pl.BlockSpec((1, C, t_hw), lambda b, t: (b, 0, t)),
        compiler_params=pltpu.CompilerParams(
            dimension_semantics=("parallel", "parallel"),
            vmem_limit_bytes=vmem_limit),
    )(x, cse_scale, w_both, coord_plane, sse_b)

    return out[:, :, :HW].reshape(B, C, H, W)


# ----------------------------------------------------------------------------
# Pure-JAX reference (matches the PyTorch forward of the SE / CoordConv(1x1) gating block)
# ----------------------------------------------------------------------------
def reference(x4d, raw):
    B, C, H, W = x4d.shape
    W1, b1, W2, b2 = raw["W1"], raw["b1"], raw["W2"], raw["b2"]
    sse_w, sse_b = raw["sse_w"], raw["sse_b"]
    cw, cb = raw["coord_w"], raw["coord_b"]

    # cSE
    sq = x4d.reshape(B, C, -1).mean(-1)
    h = jax.nn.relu(sq @ W1.T + b1)
    s = jax.nn.sigmoid(h @ W2.T + b2)
    cse = x4d * s[:, :, None, None]
    # sSE
    sse_logit = jnp.einsum("bchw,c->bhw", x4d, sse_w) + sse_b
    sse = x4d * jax.nn.sigmoid(sse_logit)[:, None]
    # CoordConv SE
    hh = jnp.arange(H, dtype=jnp.float32)[:, None] / (H - 1) * 2.0 - 1.0
    ww = jnp.arange(W, dtype=jnp.float32)[None, :] / (W - 1) * 2.0 - 1.0
    xx = jnp.broadcast_to(hh, (H, W))
    yy = jnp.broadcast_to(ww, (H, W))
    coord_logit = (jnp.einsum("bchw,c->bhw", x4d, cw[:C])
                   + cw[C] * xx[None] + cw[C + 1] * yy[None] + cb)
    coord = x4d * jax.nn.sigmoid(coord_logit)[:, None]
    return cse + sse + coord


if __name__ == "__main__":
    # NOTE on tolerances: the kernel's channel reductions run on the MXU; for f32 inputs the
    # MXU's default precision is bf16-pass based while the XLA reference may reduce in exact
    # f32, so f32 comparisons use ~1e-2 tolerances (structural bugs are O(0.1+)).
    def make_params(key, C, Cr):
        ks = jax.random.split(key, 8)
        return dict(
            W1=jax.random.normal(ks[0], (Cr, C), jnp.float32) * 0.3,
            b1=jax.random.normal(ks[1], (Cr,), jnp.float32) * 0.1,
            W2=jax.random.normal(ks[2], (C, Cr), jnp.float32) * 0.3,
            b2=jax.random.normal(ks[3], (C,), jnp.float32) * 0.1,
            sse_w=jax.random.normal(ks[4], (C,), jnp.float32) * 0.3,
            sse_b=jax.random.normal(ks[5], (), jnp.float32) * 0.1,
            coord_w=jax.random.normal(ks[6], (C + 2,), jnp.float32) * 0.3,
            coord_b=jax.random.normal(ks[7], (), jnp.float32) * 0.1,
        )

    root = jax.random.PRNGKey(0)
    kp, kx = jax.random.split(root)

    # 1) small f32: fused single-pass path (B=2, C=4, 16x16)
    x = jax.random.normal(kx, (2, 4, 16, 16), jnp.float32)
    raw = make_params(kp, 4, 2)
    ref = jax.block_until_ready(reference(x, raw))
    out = jax.block_until_ready(channel_spatial_se_coord(x, raw))
    np.testing.assert_allclose(np.asarray(out), np.asarray(ref), rtol=1e-2, atol=1e-2)

    # 2) same data, forced two-pass path with a tiny tile cap -> exercises the streamed
    #    spatial reduction (n_hw > 1) and the pl.when init/finalize accumulator.
    out2 = jax.block_until_ready(
        channel_spatial_se_coord(x, raw, force_two_pass=True, max_tile_bytes=4 * 128 * 4))
    np.testing.assert_allclose(np.asarray(out2), np.asarray(ref), rtol=1e-2, atol=1e-2)

    # 3) HW not a multiple of 128 (12x12 -> padded to 256), C=16, both paths.
    kp3, kx3 = jax.random.split(kx)
    xb = jax.random.normal(kx3, (2, 16, 12, 12), jnp.float32)
    rawb = make_params(kp3, 16, 8)
    refb = jax.block_until_ready(reference(xb, rawb))
    outb = jax.block_until_ready(channel_spatial_se_coord(xb, rawb))
    np.testing.assert_allclose(np.asarray(outb), np.asarray(refb), rtol=1e-2, atol=1e-2)
    outb2 = jax.block_until_ready(channel_spatial_se_coord(xb, rawb, force_two_pass=True))
    np.testing.assert_allclose(np.asarray(outb2), np.asarray(refb), rtol=1e-2, atol=1e-2)

    # 4) MXU-sized channel dim (C=128) to exercise full-tile matmuls.
    kp4, kx4 = jax.random.split(kx3)
    xc = jax.random.normal(kx4, (2, 128, 8, 8), jnp.float32)
    rawc = make_params(kp4, 128, 64)
    refc = jax.block_until_ready(reference(xc, rawc))
    outc = jax.block_until_ready(channel_spatial_se_coord(xc, rawc))
    np.testing.assert_allclose(np.asarray(outc), np.asarray(refc), rtol=3e-2, atol=3e-2)

    # 5) bf16 input path (no eager full-tile up-cast; bf16 fed to the MXU directly).
    kp5, kx5 = jax.random.split(kx4)
    xd = jax.random.normal(kx5, (2, 8, 16, 16), jnp.float32).astype(jnp.bfloat16)
    rawd = make_params(kp5, 8, 4)
    refd = jax.block_until_ready(reference(xd.astype(jnp.float32), rawd))
    outd = jax.block_until_ready(channel_spatial_se_coord(xd, rawd))
    np.testing.assert_allclose(np.asarray(outd, dtype=np.float32), np.asarray(refd),
                               rtol=5e-2, atol=5e-2)

    print("KERNEL_OK")
</pallas_src>

<mosaic_0001>
module attributes {stable_mosaic.version = 11 : i64} {
  func.func @kernel(%arg0: i32, %arg1: memref<1x4x256xf32, #tpu.memory_space<vmem>>, %arg2: memref<2x4xf32, #tpu.memory_space<vmem>>, %arg3: memref<2x1xf32, #tpu.memory_space<vmem>>, %arg4: memref<4x2xf32, #tpu.memory_space<vmem>>, %arg5: memref<4x1xf32, #tpu.memory_space<vmem>>, %arg6: memref<2x4xf32, #tpu.memory_space<vmem>>, %arg7: memref<1x256xf32, #tpu.memory_space<vmem>>, %arg8: memref<1xf32, #tpu.memory_space<smem>>, %arg9: memref<1x4x256xf32, #tpu.memory_space<vmem>>) attributes {dimension_semantics = [#tpu.dimension_semantics<parallel>], iteration_bounds = array<i64: 2>, scalar_prefetch = 0 : i64, scratch_operands = 0 : i64, tpu.core_type = #tpu.core_type<tc>, window_params = [{transform_indices = @transform_0, window_bounds = array<i64: 1, 4, 256>}, {pipeline_mode = #tpu.pipeline_mode<synchronous>, transform_indices = @transform_1, window_bounds = array<i64: 2, 4>}, {pipeline_mode = #tpu.pipeline_mode<synchronous>, transform_indices = @transform_2, window_bounds = array<i64: 2, 1>}, {pipeline_mode = #tpu.pipeline_mode<synchronous>, transform_indices = @transform_3, window_bounds = array<i64: 4, 2>}, {pipeline_mode = #tpu.pipeline_mode<synchronous>, transform_indices = @transform_4, window_bounds = array<i64: 4, 1>}, {pipeline_mode = #tpu.pipeline_mode<synchronous>, transform_indices = @transform_5, window_bounds = array<i64: 2, 4>}, {pipeline_mode = #tpu.pipeline_mode<synchronous>, transform_indices = @transform_6, window_bounds = array<i64: 1, 256>}, {transform_indices = @transform_7, window_bounds = array<i64: 1>}, {transform_indices = @transform_8, window_bounds = array<i64: 1, 4, 256>}]} {
    %c0 = arith.constant 0 : index
    %c0_0 = arith.constant 0 : index
    %c0_1 = arith.constant 0 : index
    %0 = vector.load %arg1[%c0, %c0_0, %c0_1] : memref<1x4x256xf32, #tpu.memory_space<vmem>>, vector<1x4x256xf32>
    %1 = vector.shape_cast %0 : vector<1x4x256xf32> to vector<4x256xf32>
    %cst = arith.constant dense<0.000000e+00> : vector<4xf32>
    %2 = vector.multi_reduction <add>, %1, %cst [1] : vector<4x256xf32> to vector<4xf32>
    %3 = vector.shape_cast %2 : vector<4xf32> to vector<4x1xf32>
    %cst_2 = arith.constant 3.906250e-03 : f32
    %4 = vector.broadcast %cst_2 : f32 to vector<4x1xf32>
    %5 = arith.mulf %3, %4 : vector<4x1xf32>
    %c0_3 = arith.constant 0 : index
    %c0_4 = arith.constant 0 : index
    %6 = vector.load %arg2[%c0_3, %c0_4] : memref<2x4xf32, #tpu.memory_space<vmem>>, vector<2x4xf32>
    %cst_5 = arith.constant dense<0.000000e+00> : vector<2x1xf32>
    %7 = tpu.matmul %6, %5, %cst_5 {dimension_numbers = #tpu.dot_dimension_numbers<[1], [0], [0], [1], [0, 0, 1, 1], [], []>} : vector<2x4xf32>, vector<4x1xf32>, vector<2x1xf32> -> vector<2x1xf32>
    %c0_6 = arith.constant 0 : index
    %c0_7 = arith.constant 0 : index
    %8 = vector.load %arg3[%c0_6, %c0_7] : memref<2x1xf32, #tpu.memory_space<vmem>>, vector<2x1xf32>
    %9 = arith.addf %7, %8 : vector<2x1xf32>
    %cst_8 = arith.constant 0.000000e+00 : f32
    %10 = vector.broadcast %cst_8 : f32 to vector<2x1xf32>
    %11 = arith.maximumf %9, %10 : vector<2x1xf32>
    %c0_9 = arith.constant 0 : index
    %c0_10 = arith.constant 0 : index
    %12 = vector.load %arg4[%c0_9, %c0_10] : memref<4x2xf32, #tpu.memory_space<vmem>>, vector<4x2xf32>
    %cst_11 = arith.constant dense<0.000000e+00> : vector<4x1xf32>
    %13 = tpu.matmul %12, %11, %cst_11 {dimension_numbers = #tpu.dot_dimension_numbers<[1], [0], [0], [1], [0, 0, 1, 1], [], []>} : vector<4x2xf32>, vector<2x1xf32>, vector<4x1xf32> -> vector<4x1xf32>
    %c0_12 = arith.constant 0 : index
    %c0_13 = arith.constant 0 : index
    %14 = vector.load %arg5[%c0_12, %c0_13] : memref<4x1xf32, #tpu.memory_space<vmem>>, vector<4x1xf32>
    %15 = arith.addf %13, %14 : vector<4x1xf32>
    %16 = arith.negf %15 : vector<4x1xf32>
    %17 = math.exp %16 : vector<4x1xf32>
    %cst_14 = arith.constant 1.000000e+00 : f32
    %18 = vector.broadcast %cst_14 : f32 to vector<4x1xf32>
    %19 = arith.addf %18, %17 : vector<4x1xf32>
    %20 = arith.divf %18, %19 : vector<4x1xf32>
    %c0_15 = arith.constant 0 : index
    %c0_16 = arith.constant 0 : index
    %21 = vector.load %arg7[%c0_15, %c0_16] : memref<1x256xf32, #tpu.memory_space<vmem>>, vector<1x256xf32>
    %c0_17 = arith.constant 0 : index
    %22 = memref.load %arg8[%c0_17] : memref<1xf32, #tpu.memory_space<smem>>
    %c0_18 = arith.constant 0 : index
    %c0_19 = arith.constant 0 : index
    %23 = vector.load %arg6[%c0_18, %c0_19] : memref<2x4xf32, #tpu.memory_space<vmem>>, vector<2x4xf32>
    %cst_20 = arith.constant dense<0.000000e+00> : vector<2x256xf32>
    %24 = tpu.matmul %23, %1, %cst_20 {dimension_numbers = #tpu.dot_dimension_numbers<[1], [0], [0], [1], [0, 0, 1, 1], [], []>} : vector<2x4xf32>, vector<4x256xf32>, vector<2x256xf32> -> vector<2x256xf32>
    %25 = vector.extract_strided_slice %24 {offsets = [0, 0], sizes = [1, 256], strides = [1, 1]} : vector<2x256xf32> to vector<1x256xf32>
    %26 = vector.broadcast %22 : f32 to vector<1x256xf32>
    %27 = arith.addf %25, %26 : vector<1x256xf32>
    %28 = arith.negf %27 : vector<1x256xf32>
    %29 = math.exp %28 : vector<1x256xf32>
    %cst_21 = arith.constant 1.000000e+00 : f32
    %30 = vector.broadcast %cst_21 : f32 to vector<1x256xf32>
    %31 = arith.addf %30, %29 : vector<1x256xf32>
    %32 = arith.divf %30, %31 : vector<1x256xf32>
    %33 = vector.extract_strided_slice %24 {offsets = [1, 0], sizes = [1, 256], strides = [1, 1]} : vector<2x256xf32> to vector<1x256xf32>
    %34 = arith.addf %33, %21 : vector<1x256xf32>
    %35 = arith.negf %34 : vector<1x256xf32>
    %36 = math.exp %35 : vector<1x256xf32>
    %cst_22 = arith.constant 1.000000e+00 : f32
    %37 = vector.broadcast %cst_22 : f32 to vector<1x256xf32>
    %38 = arith.addf %37, %36 : vector<1x256xf32>
    %39 = arith.divf %37, %38 : vector<1x256xf32>
    %40 = arith.addf %32, %39 : vector<1x256xf32>
    %41 = vector.broadcast %20 : vector<4x1xf32> to vector<4x256xf32>
    %42 = vector.broadcast %40 : vector<1x256xf32> to vector<4x256xf32>
    %43 = arith.addf %41, %42 : vector<4x256xf32>
    %44 = arith.mulf %1, %43 : vector<4x256xf32>
    %c0_23 = arith.constant 0 : index
    %c0_24 = arith.constant 0 : index
    %c0_25 = arith.constant 0 : index
    %45 = vector.load %arg9[%c0_23, %c0_24, %c0_25] : memref<1x4x256xf32, #tpu.memory_space<vmem>>, vector<1x4x256xf32>
    %46 = vector.shape_cast %45 : vector<1x4x256xf32> to vector<4x256xf32>
    %47 = vector.shape_cast %44 : vector<4x256xf32> to vector<1x4x256xf32>
    tpu.vector_store %arg9[%c0_23, %c0_24, %c0_25], %47 {strides = array<i32>} : memref<1x4x256xf32, #tpu.memory_space<vmem>>, vector<1x4x256xf32>,
    return
  }
  func.func @transform_0(%arg0: i32) -> (i32, i32, i32) {
    %c0_i32 = arith.constant 0 : i32
    %c0_i32_0 = arith.constant 0 : i32
    %c0_i32_1 = arith.constant 0 : i32
    return %arg0, %c0_i32, %c0_i32_0 : i32, i32, i32
  }
  func.func @transform_1(%arg0: i32) -> (i32, i32) {
    %c0_i32 = arith.constant 0 : i32
    %c0_i32_0 = arith.constant 0 : i32
    %c0_i32_1 = arith.constant 0 : i32
    return %c0_i32, %c0_i32_0 : i32, i32
  }
  func.func @transform_2(%arg0: i32) -> (i32, i32) {
    %c0_i32 = arith.constant 0 : i32
    %c0_i32_0 = arith.constant 0 : i32
    %c0_i32_1 = arith.constant 0 : i32
    return %c0_i32, %c0_i32_0 : i32, i32
  }
  func.func @transform_3(%arg0: i32) -> (i32, i32) {
    %c0_i32 = arith.constant 0 : i32
    %c0_i32_0 = arith.constant 0 : i32
    %c0_i32_1 = arith.constant 0 : i32
    return %c0_i32, %c0_i32_0 : i32, i32
  }
  func.func @transform_4(%arg0: i32) -> (i32, i32) {
    %c0_i32 = arith.constant 0 : i32
    %c0_i32_0 = arith.constant 0 : i32
    %c0_i32_1 = arith.constant 0 : i32
    return %c0_i32, %c0_i32_0 : i32, i32
  }
  func.func @transform_5(%arg0: i32) -> (i32, i32) {
    %c0_i32 = arith.constant 0 : i32
    %c0_i32_0 = arith.constant 0 : i32
    %c0_i32_1 = arith.constant 0 : i32
    return %c0_i32, %c0_i32_0 : i32, i32
  }
  func.func @transform_6(%arg0: i32) -> (i32, i32) {
    %c0_i32 = arith.constant 0 : i32
    %c0_i32_0 = arith.constant 0 : i32
    %c0_i32_1 = arith.constant 0 : i32
    return %c0_i32, %c0_i32_0 : i32, i32
  }
  func.func @transform_7(%arg0: i32) -> i32 {
    %c0_i32 = arith.constant 0 : i32
    %c0_i32_0 = arith.constant 0 : i32
    return %c0_i32 : i32
  }
  func.func @transform_8(%arg0: i32) -> (i32, i32, i32) {
    %c0_i32 = arith.constant 0 : i32
    %c0_i32_0 = arith.constant 0 : i32
    %c0_i32_1 = arith.constant 0 : i32
    return %arg0, %c0_i32, %c0_i32_0 : i32, i32, i32
  }
}

</mosaic_0001>

<llo_original>
// kernel: tpu_custom_call.1
$region0: #{tpu_custom_call.1}
  #allocation0 [shape = 'u32[]', space=smem, size = 0x4, offset = 0x4, fixed_abs, tag = 'smem constant byte address 0x4 - core index']
  #allocation1 [shape = 'u32[144,128]{1,0:T(1,128)}', space=vmem, size = 0x12000, scoped, tag = 'internal scratch']
  #allocation2 [shape = 'f32[1]{0:T(128)S(6)}', space=smem, size = 0x200, scoped, tag = 'scoped memory for tpu_custom_call.1']
  %s0 = inlined_call_operand.vmem [shape: f32[2,4,256], index: 0, kind: input, shape index: {}]
  %s1 = inlined_call_operand.vmem [shape: f32[2,4], index: 1, kind: input, shape index: {}]
  %s2 = inlined_call_operand.vmem [shape: f32[2,1], index: 2, kind: input, shape index: {}]
  %s3 = inlined_call_operand.vmem [shape: f32[4,2], index: 3, kind: input, shape index: {}]
  %s4 = inlined_call_operand.vmem [shape: f32[4,1], index: 4, kind: input, shape index: {}]
  %s5 = inlined_call_operand.vmem [shape: f32[2,4], index: 5, kind: input, shape index: {}]
  %s6 = inlined_call_operand.vmem [shape: f32[1,256], index: 6, kind: input, shape index: {}]
  %s7 = inlined_call_operand.<no memory space> [shape: f32[1], index: 7, kind: input, shape index: {}]
  %s8 = inlined_call_operand.hbm [shape: f32[2,4,256], index: 8, kind: output, shape index: {}]
  %s9 = sld [smem:[#allocation0]]
  $region65: #{tpu_custom_call.1} parent=0
    _
  %s11 = ssub.s32 1, %s9
  %s12 = scalar_select 0, %s11, %s9
  %13 = sst [smem:[#allocation2]] %s7
  $region1: #{tpu_custom_call.1} parent=0
    #allocation3 [shape = 'u8[8192]{0}', space=vmem, size = 0x2000, scoped, tag = 'output window, operand 0']
    #allocation4 [shape = 's32[2]{0}', space=sflag, size = 0x8, scoped, tag = 'scoped memory for tpu_custom_call.1']
    %14 = vsyncpa [#allocation4], 0
    %s15 = scalar_lea.sflag [#allocation4], 1
    %16 = vsyncpa %s15, 0
    loop: start=0, step=1, limit=4
    $region2: #{tpu_custom_call.1} parent=1 // loop_pre_header
      _
    $region3: #{tpu_custom_call.1} parent=1 // loop_header
      %s18 = sphi 0, %s22
      %p19 = scmp.ge.s32.totalorder %s18, 4
      %s28 = sphi 0, %s30
      %s31 = sphi 0, %s28
      %s32 = sphi 0, %s31
      %s48 = sphi 0, %s32
      %s52 = sphi 0, %s52
      %s54 = sphi 0, %s52
      %s55 = sphi 0, %s54
      %s69 = sphi 0, %s55
      %s73 = sphi 0, %s73
      %s75 = sphi 0, %s73
      %s76 = sphi 0, %s75
      %s90 = sphi 0, %s76
      %s94 = sphi 0, %s94
      %s96 = sphi 0, %s94
      %s97 = sphi 0, %s96
      %s111 = sphi 0, %s97
      %s115 = sphi 0, %s115
      %s117 = sphi 0, %s115
      %s118 = sphi 0, %s117
      %s132 = sphi 0, %s118
      %s136 = sphi 0, %s136
      %s138 = sphi 0, %s136
      %s139 = sphi 0, %s138
      %s153 = sphi 0, %s139
      %s157 = sphi 0, %s157
      %s159 = sphi 0, %s157
      %s160 = sphi 0, %s159
      %s174 = sphi 0, %s160
      %s178 = sphi 0, %s178
      %s180 = sphi 0, %s178
      %s181 = sphi 0, %s180
      %s195 = sphi 0, %s181
      %s201 = sphi 0, %s203
      %s204 = sphi 0, %s201
      %s205 = sphi 0, %s204
      %s221 = sphi 0, %s205
    $region4: #{tpu_custom_call.1} parent=1 // loop_header_branch
      %21 = sbr.rel (%p19) target = $region8
    $region5: #{tpu_custom_call.1} parent=1 // loop_body
      %s23 = ssub.s32 %s18, 1
      %s24 = ssub.s32 %s18, 2
      %s25 = sadd.s32 %s18, 1
      %s26 = ssub.s32 %s18, %s25
      %p27 = scmp.eq.s32.totalorder %s26, 0
      %s29 = sadd.s32 %s28, 1
      %s30 = scalar_select %p27, %s28, %s29
      %p33 = pneg %p27
      %p34 = scmp.eq.s32.totalorder %s18, 1
      %p35 = por %p33, %p34
      %p36 = scmp.ne.s32.totalorder %s28, %s31
      %p37 = scmp.eq.s32.totalorder %s18, 0
      %p38 = por %p36, %p37
      %p39 = scmp.ne.s32.totalorder %s28, %s31
      %p40 = scmp.eq.s32.totalorder %s23, 1
      %p41 = por %p39, %p40
      %p42 = scmp.ne.s32.totalorder %s31, %s32
      %p43 = scmp.eq.s32.totalorder %s23, 0
      %p44 = por %p42, %p43
      %p45 = scmp.ne.s32.totalorder %s31, %s32
      %p46 = scmp.eq.s32.totalorder %s24, 1
      %p47 = por %p45, %p46
      %p49 = scmp.ne.s32.totalorder %s32, %s48
      %p50 = scmp.eq.s32.totalorder %s24, 0
      %p51 = por %p49, %p50
      %s53 = sadd.s32 %s52, 1
      %p56 = scmp.eq.s32.totalorder %s18, 1
      %p57 = scmp.ne.s32.totalorder %s52, %s54
      %p58 = scmp.eq.s32.totalorder %s18, 0
      %p59 = por %p57, %p58
      %p60 = scmp.ne.s32.totalorder %s52, %s54
      %p61 = scmp.eq.s32.totalorder %s23, 1
      %p62 = por %p60, %p61
      %p63 = scmp.ne.s32.totalorder %s54, %s55
      %p64 = scmp.eq.s32.totalorder %s23, 0
      %p65 = por %p63, %p64
      %p66 = scmp.ne.s32.totalorder %s54, %s55
      %p67 = scmp.eq.s32.totalorder %s24, 1
      %p68 = por %p66, %p67
      %p70 = scmp.ne.s32.totalorder %s55, %s69
      %p71 = scmp.eq.s32.totalorder %s24, 0
      %p72 = por %p70, %p71
      %s74 = sadd.s32 %s73, 1
      %p77 = scmp.eq.s32.totalorder %s18, 1
      %p78 = scmp.ne.s32.totalorder %s73, %s75
      %p79 = scmp.eq.s32.totalorder %s18, 0
      %p80 = por %p78, %p79
      %p81 = scmp.ne.s32.totalorder %s73, %s75
      %p82 = scmp.eq.s32.totalorder %s23, 1
      %p83 = por %p81, %p82
      %p84 = scmp.ne.s32.totalorder %s75, %s76
      %p85 = scmp.eq.s32.totalorder %s23, 0
      %p86 = por %p84, %p85
      %p87 = scmp.ne.s32.totalorder %s75, %s76
      %p88 = scmp.eq.s32.totalorder %s24, 1
      %p89 = por %p87, %p88
      %p91 = scmp.ne.s32.totalorder %s76, %s90
      %p92 = scmp.eq.s32.totalorder %s24, 0
      %p93 = por %p91, %p92
      %s95 = sadd.s32 %s94, 1
      %p98 = scmp.eq.s32.totalorder %s18, 1
      %p99 = scmp.ne.s32.totalorder %s94, %s96
      %p100 = scmp.eq.s32.totalorder %s18, 0
      %p101 = por %p99, %p100
      %p102 = scmp.ne.s32.totalorder %s94, %s96
      %p103 = scmp.eq.s32.totalorder %s23, 1
      %p104 = por %p102, %p103
      %p105 = scmp.ne.s32.totalorder %s96, %s97
      %p106 = scmp.eq.s32.totalorder %s23, 0
      %p107 = por %p105, %p106
      %p108 = scmp.ne.s32.totalorder %s96, %s97
      %p109 = scmp.eq.s32.totalorder %s24, 1
      %p110 = por %p108, %p109
      %p112 = scmp.ne.s32.totalorder %s97, %s111
      %p113 = scmp.eq.s32.totalorder %s24, 0
      %p114 = por %p112, %p113
      %s116 = sadd.s32 %s115, 1
      %p119 = scmp.eq.s32.totalorder %s18, 1
      %p120 = scmp.ne.s32.totalorder %s115, %s117
      %p121 = scmp.eq.s32.totalorder %s18, 0
      %p122 = por %p120, %p121
      %p123 = scmp.ne.s32.totalorder %s115, %s117
      %p124 = scmp.eq.s32.totalorder %s23, 1
      %p125 = por %p123, %p124
      %p126 = scmp.ne.s32.totalorder %s117, %s118
      %p127 = scmp.eq.s32.totalorder %s23, 0
      %p128 = por %p126, %p127
      %p129 = scmp.ne.s32.totalorder %s117, %s118
      %p130 = scmp.eq.s32.totalorder %s24, 1
      %p131 = por %p129, %p130
      %p133 = scmp.ne.s32.totalorder %s118, %s132
      %p134 = scmp.eq.s32.totalorder %s24, 0
      %p135 = por %p133, %p134
      %s137 = sadd.s32 %s136, 1
      %p140 = scmp.eq.s32.totalorder %s18, 1
      %p141 = scmp.ne.s32.totalorder %s136, %s138
      %p142 = scmp.eq.s32.totalorder %s18, 0
      %p143 = por %p141, %p142
      %p144 = scmp.ne.s32.totalorder %s136, %s138
      %p145 = scmp.eq.s32.totalorder %s23, 1
      %p146 = por %p144, %p145
      %p147 = scmp.ne.s32.totalorder %s138, %s139
      %p148 = scmp.eq.s32.totalorder %s23, 0
      %p149 = por %p147, %p148
      %p150 = scmp.ne.s32.totalorder %s138, %s139
      %p151 = scmp.eq.s32.totalorder %s24, 1
      %p152 = por %p150, %p151
      %p154 = scmp.ne.s32.totalorder %s139, %s153
      %p155 = scmp.eq.s32.totalorder %s24, 0
      %p156 = por %p154, %p155
      %s158 = sadd.s32 %s157, 1
      %p161 = scmp.eq.s32.totalorder %s18, 1
      %p162 = scmp.ne.s32.totalorder %s157, %s159
      %p163 = scmp.eq.s32.totalorder %s18, 0
      %p164 = por %p162, %p163
      %p165 = scmp.ne.s32.totalorder %s157, %s159
      %p166 = scmp.eq.s32.totalorder %s23, 1
      %p167 = por %p165, %p166
      %p168 = scmp.ne.s32.totalorder %s159, %s160
      %p169 = scmp.eq.s32.totalorder %s23, 0
      %p170 = por %p168, %p169
      %p171 = scmp.ne.s32.totalorder %s159, %s160
      %p172 = scmp.eq.s32.totalorder %s24, 1
      %p173 = por %p171, %p172
      %p175 = scmp.ne.s32.totalorder %s160, %s174
      %p176 = scmp.eq.s32.totalorder %s24, 0
      %p177 = por %p175, %p176
      %s179 = sadd.s32 %s178, 1
      %p182 = scmp.eq.s32.totalorder %s18, 1
      %p183 = scmp.ne.s32.totalorder %s178, %s180
      %p184 = scmp.eq.s32.totalorder %s18, 0
      %p185 = por %p183, %p184
      %p186 = scmp.ne.s32.totalorder %s178, %s180
      %p187 = scmp.eq.s32.totalorder %s23, 1
      %p188 = por %p186, %p187
      %p189 = scmp.ne.s32.totalorder %s180, %s181
      %p190 = scmp.eq.s32.totalorder %s23, 0
      %p191 = por %p189, %p190
      %p192 = scmp.ne.s32.totalorder %s180, %s181
      %p193 = scmp.eq.s32.totalorder %s24, 1
      %p194 = por %p192, %p193
      %p196 = scmp.ne.s32.totalorder %s181, %s195
      %p197 = scmp.eq.s32.totalorder %s24, 0
      %p198 = por %p196, %p197
      %s199 = ssub.s32 %s18, %s25
      %p200 = scmp.eq.s32.totalorder %s199, 0
      %s202 = sadd.s32 %s201, 1
      %s203 = scalar_select %p200, %s201, %s202
      %p206 = pneg %p200
      %p207 = scmp.eq.s32.totalorder %s18, 1
      %p208 = por %p206, %p207
      %p209 = scmp.ne.s32.totalorder %s201, %s204
      %p210 = scmp.eq.s32.totalorder %s18, 0
      %p211 = por %p209, %p210
      %p212 = scmp.ne.s32.totalorder %s201, %s204
      %p213 = scmp.eq.s32.totalorder %s23, 1
      %p214 = por %p212, %p213
      %p215 = scmp.ne.s32.totalorder %s204, %s205
      %p216 = scmp.eq.s32.totalorder %s23, 0
      %p217 = por %p215, %p216
      %p218 = scmp.ne.s32.totalorder %s204, %s205
      %p219 = scmp.eq.s32.totalorder %s24, 1
      %p220 = por %p218, %p219
      %p222 = scmp.ne.s32.totalorder %s205, %s221
      %p223 = scmp.eq.s32.totalorder %s24, 0
      %p224 = por %p222, %p223
      %p225 = scmp.le.s32.totalorder 1, %s18
      %p226 = scmp.lt.s32.totalorder %s18, 3
      %p227 = pnand %p225, %p226
      %p228 = pneg %p227
      // Predicated region
      $region9: #{tpu_custom_call.1} parent=5 // pred_check
        _
      $region10: #{tpu_custom_call.1} parent=5 // pred_check_branch
        %230 = sbr.rel (%p227) target = $region12
      $region11: #{tpu_custom_call.1} parent=5 // pred_region
        %s231 = ssub.s32 %s18, 1
        // Predicated region
        $region13: #{tpu_custom_call.1} parent=11 // pred_check
          %p232 = pneg %p65
        $region14: #{tpu_custom_call.1} parent=11 // pred_check_branch
          %234 = sbr.rel (%p232) target = $region16
        $region15: #{tpu_custom_call.1} parent=11 // pred_region
          _
        $region16: #{tpu_custom_call.1} parent=11 // pred_fallthru
          _
        // Predicated region
        $region17: #{tpu_custom_call.1} parent=11 // pred_check
          %p235 = pneg %p86
        $region18: #{tpu_custom_call.1} parent=11 // pred_check_branch
          %237 = sbr.rel (%p235) target = $region20
        $region19: #{tpu_custom_call.1} parent=11 // pred_region
          _
        $region20: #{tpu_custom_call.1} parent=11 // pred_fallthru
          _
        // Predicated region
        $region21: #{tpu_custom_call.1} parent=11 // pred_check
          %p238 = pneg %p107
        $region22: #{tpu_custom_call.1} parent=11 // pred_check_branch
          %240 = sbr.rel (%p238) target = $region24
        $region23: #{tpu_custom_call.1} parent=11 // pred_region
          _
        $region24: #{tpu_custom_call.1} parent=11 // pred_fallthru
          _
        // Predicated region
        $region25: #{tpu_custom_call.1} parent=11 // pred_check
          %p241 = pneg %p128
        $region26: #{tpu_custom_call.1} parent=11 // pred_check_branch
          %243 = sbr.rel (%p241) target = $region28
        $region27: #{tpu_custom_call.1} parent=11 // pred_region
          _
        $region28: #{tpu_custom_call.1} parent=11 // pred_fallthru
          _
        // Predicated region
        $region29: #{tpu_custom_call.1} parent=11 // pred_check
          %p244 = pneg %p149
        $region30: #{tpu_custom_call.1} parent=11 // pred_check_branch
          %246 = sbr.rel (%p244) target = $region32
        $region31: #{tpu_custom_call.1} parent=11 // pred_region
          _
        $region32: #{tpu_custom_call.1} parent=11 // pred_fallthru
          _
        // Predicated region
        $region33: #{tpu_custom_call.1} parent=11 // pred_check
          %p247 = pneg %p170
        $region34: #{tpu_custom_call.1} parent=11 // pred_check_branch
          %249 = sbr.rel (%p247) target = $region36
        $region35: #{tpu_custom_call.1} parent=11 // pred_region
          _
        $region36: #{tpu_custom_call.1} parent=11 // pred_fallthru
          _
        // Predicated region
        $region37: #{tpu_custom_call.1} parent=11 // pred_check
          %p250 = pneg %p191
        $region38: #{tpu_custom_call.1} parent=11 // pred_check_branch
          %252 = sbr.rel (%p250) target = $region40
        $region39: #{tpu_custom_call.1} parent=11 // pred_region
          _
        $region40: #{tpu_custom_call.1} parent=11 // pred_fallthru
          _
      $region12: #{tpu_custom_call.1} parent=5 // pred_fallthru
        _
      %p253 = scmp.lt.s32.totalorder %s18, 2
      // Predicated region
      $region41: #{tpu_custom_call.1} parent=5 // pred_check
        %p254 = pneg %p253
      $region42: #{tpu_custom_call.1} parent=5 // pred_check_branch
        %256 = sbr.rel (%p254) target = $region44
      $region43: #{tpu_custom_call.1} parent=5 // pred_region
        // Predicated region
        $region45: #{tpu_custom_call.1} parent=43 // pred_check
          %p257 = pneg %p38
        $region46: #{tpu_custom_call.1} parent=43 // pred_check_branch
          %259 = sbr.rel (%p257) target = $region48
        $region47: #{tpu_custom_call.1} parent=43 // pred_region
          %p260 = scmp.lt.s32.totalorder %s18, 1
          %s261 = scalar_select %p260, %s18, 1
          %s262 = smul.addr %s261, 2
          %s263 = smul.addr %s262, 4
          %s264 = scalar_lea.vmem %s0, %s263
        $region48: #{tpu_custom_call.1} parent=43 // pred_fallthru
          _
      $region44: #{tpu_custom_call.1} parent=5 // pred_fallthru
        _
      %p265 = scmp.le.s32.totalorder 1, %s18
      %p266 = scmp.lt.s32.totalorder %s18, 3
      %p267 = pnand %p265, %p266
      %p268 = pneg %p267
      // Predicated region
      $region49: #{tpu_custom_call.1} parent=5 // pred_check
        _
      $region50: #{tpu_custom_call.1} parent=5 // pred_check_branch
        %270 = sbr.rel (%p267) target = $region52
      $region51: #{tpu_custom_call.1} parent=5 // pred_region
        %s271 = ssub.s32 %s18, 1
        %p272 = scmp.lt.s32.totalorder %s23, 1
        %s273 = scalar_select %p272, %s23, 1
        %s274 = smul.addr %s273, 2
        %s275 = smul.addr %s274, 4
        %s276 = scalar_lea.vmem %s0, %s275
        %p277 = pneg %p44
        %p278 = pneg %p41
        %p279 = pneg %p65
        %p280 = pneg %p62
        %p281 = pneg %p86
        %p282 = pneg %p83
        %p283 = pneg %p107
        %p284 = pneg %p104
        %p285 = pneg %p128
        %p286 = pneg %p125
        %p287 = pneg %p149
        %p288 = pneg %p146
        %p289 = pneg %p170
        %p290 = pneg %p167
        %p291 = pneg %p191
        %p292 = pneg %p188
        %p293 = pneg %p217
        %p294 = pneg %p214
        %s295 = sand.u32 %s204, 1
        %s296 = scalar_lea.sflag [#allocation4], %s295
        %s297 = sand.u32 %s204, 1
        %s298 = smul.addr %s297, 8
        %s299 = scalar_lea.vmem [#allocation3], %s298
        %p300 = scmp.lt.s32.totalorder %s23, 1
        %s301 = scalar_select %p300, %s23, 1
        %s302 = smul.addr %s301, 2
        %s303 = smul.addr %s302, 4
        %s304 = scalar_lea.vmem %s0, %s303
        %v305 = vld [vmem:[%s304] sm:$0xff]
        %v307 = vcombine.high %v305, %v305
        %vm309 = vcmask 1043456
        %v310 = vsel %vm309, %v305, 0.0
        %v311 = vsel %vm309, %v307, 0.0
        %v312 = vadd.f32 %v310, %v311
        %313 = vadd.xlane.f32.xlu0 %v312
        %v314 = vpop.xlane.xlu0 %313
        %v315 = vmul.f32 %v314, 0.00390625
        %v316 = vld [vmem:[%s1] sm:$0x3]
        %v317 = vld [vmem:[%s2] sm:$0x3]
        %vm318 = vcmask 31744
        %v320 = vsel %vm318, %v316, 0
        %v323 = vsel %vm309, %v315, 0
        %325 = vmatprep.subr.mxu0 0.0
        %326 = vmatpush1.msra.mxu0 %v323
        %327 = vmatprep.subr.mxu0 0.0
        %328 = vmatpush1.msra.mxu0 0.0
        %329 = vmatprep.subr.mxu0 0.0
        %330 = vmatpush1.msra.mxu0 0.0
        %331 = vmatprep.subr.mxu0 0.0
        %332 = vmatpush1.msra.mxu0 0.0
        %333 = vmatprep.subr.mxu0 0.0
        %334 = vmatpush1.msra.mxu0 0.0
        %335 = vmatprep.subr.mxu0 0.0
        %336 = vmatpush1.msra.mxu0 0.0
        %337 = vmatprep.subr.mxu0 0.0
        %338 = vmatpush1.msra.mxu0 0.0
        %339 = vmatprep.subr.mxu0 0.0
        %340 = vmatpush1.msra.mxu0 0.0
        %341 = vmatprep.subr.mxu0 0.0
        %342 = vmatpush1.msra.mxu0 0.0
        %343 = vmatprep.subr.mxu0 0.0
        %344 = vmatpush1.msra.mxu0 0.0
        %345 = vmatprep.subr.mxu0 0.0
        %346 = vmatpush1.msra.mxu0 0.0
        %347 = vmatprep.subr.mxu0 0.0
        %348 = vmatpush1.msra.mxu0 0.0
        %349 = vmatprep.subr.mxu0 0.0
        %350 = vmatpush1.msra.mxu0 0.0
        %351 = vmatprep.subr.mxu0 0.0
        %352 = vmatpush1.msra.mxu0 0.0
        %353 = vmatprep.subr.mxu0 0.0
        %354 = vmatpush1.msra.mxu0 0.0
        %355 = vmatprep.subr.mxu0 0.0
        %356 = vmatpush1.msra.mxu0 0.0
        %357 = vmatprep.subr.mxu0 0.0
        %358 = vmatpush1.msra.mxu0 0.0
        %359 = vmatprep.subr.mxu0 0.0
        %360 = vmatpush1.msra.mxu0 0.0
        %361 = vmatprep.subr.mxu0 0.0
        %362 = vmatpush1.msra.mxu0 0.0
        %363 = vmatprep.subr.mxu0 0.0
        %364 = vmatpush1.msra.mxu0 0.0
        %365 = vmatprep.subr.mxu0 0.0
        %366 = vmatpush1.msra.mxu0 0.0
        %367 = vmatprep.subr.mxu0 0.0
        %368 = vmatpush1.msra.mxu0 0.0
        %369 = vmatprep.subr.mxu0 0.0
        %370 = vmatpush1.msra.mxu0 0.0
        %371 = vmatprep.subr.mxu0 0.0
        %372 = vmatpush1.msra.mxu0 0.0
        %373 = vmatprep.subr.mxu0 0.0
        %374 = vmatpush1.msra.mxu0 0.0
        %375 = vmatprep.subr.mxu0 0.0
        %376 = vmatpush1.msra.mxu0 0.0
        %377 = vmatprep.subr.mxu0 0.0
        %378 = vmatpush1.msra.mxu0 0.0
        %379 = vmatprep.subr.mxu0 0.0
        %380 = vmatpush1.msra.mxu0 0.0
        %381 = vmatprep.subr.mxu0 0.0
        %382 = vmatpush1.msra.mxu0 0.0
        %383 = vmatprep.subr.mxu0 0.0
        %384 = vmatpush1.msra.mxu0 0.0
        %385 = vmatprep.subr.mxu0 0.0
        %386 = vmatpush1.msra.mxu0 0.0
        %387 = vmatprep.subr.mxu0 0.0
        %388 = vmatpush1.msra.mxu0 0.0
        %389 = vmatprep.mubr.f32.mxu0 0.0
        %390 = vmatmul.mubr.f32.gmra.mrb[0].mxu0 %v320
        %v391 = vpop.f32.mrb[0].mxu0
        %v392 = vadd.f32 %v317, %v391
        %v393 = vpop.f32.mrb[0].mxu0
        %394 = vdwg.mxu0
        %v395 = vmax.f32 %v392, 0.0
        %v396 = vld [vmem:[%s3] sm:$0xf]
        %v397 = vld [vmem:[%s4] sm:$0xf]
        %vm398 = vcmask 15360
        %v400 = vsel %vm398, %v396, 0
        %vm402 = vcmask 1041408
        %v404 = vsel %vm402, %v395, 0
        %406 = vmatprep.subr.mxu0 0.0
        %407 = vmatpush1.msra.mxu0 %v404
        %408 = vmatprep.subr.mxu0 0.0
        %409 = vmatpush1.msra.mxu0 0.0
        %410 = vmatprep.subr.mxu0 0.0
        %411 = vmatpush1.msra.mxu0 0.0
        %412 = vmatprep.subr.mxu0 0.0
        %413 = vmatpush1.msra.mxu0 0.0
        %414 = vmatprep.subr.mxu0 0.0
        %415 = vmatpush1.msra.mxu0 0.0
        %416 = vmatprep.subr.mxu0 0.0
        %417 = vmatpush1.msra.mxu0 0.0
        %418 = vmatprep.subr.mxu0 0.0
        %419 = vmatpush1.msra.mxu0 0.0
        %420 = vmatprep.subr.mxu0 0.0
        %421 = vmatpush1.msra.mxu0 0.0
        %422 = vmatprep.subr.mxu0 0.0
        %423 = vmatpush1.msra.mxu0 0.0
        %424 = vmatprep.subr.mxu0 0.0
        %425 = vmatpush1.msra.mxu0 0.0
        %426 = vmatprep.subr.mxu0 0.0
        %427 = vmatpush1.msra.mxu0 0.0
        %428 = vmatprep.subr.mxu0 0.0
        %429 = vmatpush1.msra.mxu0 0.0
        %430 = vmatprep.subr.mxu0 0.0
        %431 = vmatpush1.msra.mxu0 0.0
        %432 = vmatprep.subr.mxu0 0.0
        %433 = vmatpush1.msra.mxu0 0.0
        %434 = vmatprep.subr.mxu0 0.0
        %435 = vmatpush1.msra.mxu0 0.0
        %436 = vmatprep.subr.mxu0 0.0
        %437 = vmatpush1.msra.mxu0 0.0
        %438 = vmatprep.subr.mxu0 0.0
        %439 = vmatpush1.msra.mxu0 0.0
        %440 = vmatprep.subr.mxu0 0.0
        %441 = vmatpush1.msra.mxu0 0.0
        %442 = vmatprep.subr.mxu0 0.0
        %443 = vmatpush1.msra.mxu0 0.0
        %444 = vmatprep.subr.mxu0 0.0
        %445 = vmatpush1.msra.mxu0 0.0
        %446 = vmatprep.subr.mxu0 0.0
        %447 = vmatpush1.msra.mxu0 0.0
        %448 = vmatprep.subr.mxu0 0.0
        %449 = vmatpush1.msra.mxu0 0.0
        %450 = vmatprep.subr.mxu0 0.0
        %451 = vmatpush1.msra.mxu0 0.0
        %452 = vmatprep.subr.mxu0 0.0
        %453 = vmatpush1.msra.mxu0 0.0
        %454 = vmatprep.subr.mxu0 0.0
        %455 = vmatpush1.msra.mxu0 0.0
        %456 = vmatprep.subr.mxu0 0.0
        %457 = vmatpush1.msra.mxu0 0.0
        %458 = vmatprep.subr.mxu0 0.0
        %459 = vmatpush1.msra.mxu0 0.0
        %460 = vmatprep.subr.mxu0 0.0
        %461 = vmatpush1.msra.mxu0 0.0
        %462 = vmatprep.subr.mxu0 0.0
        %463 = vmatpush1.msra.mxu0 0.0
        %464 = vmatprep.subr.mxu0 0.0
        %465 = vmatpush1.msra.mxu0 0.0
        %466 = vmatprep.subr.mxu0 0.0
        %467 = vmatpush1.msra.mxu0 0.0
        %468 = vmatprep.subr.mxu0 0.0
        %469 = vmatpush1.msra.mxu0 0.0
        %470 = vmatprep.mubr.f32.mxu0 0.0
        %471 = vmatmul.mubr.f32.gmra.mrb[0].mxu0 %v400
        %v472 = vpop.f32.mrb[0].mxu0
        %v473 = vadd.f32 %v397, %v472
        %v474 = vpop.f32.mrb[0].mxu0
        %475 = vdwg.mxu0
        %v476 = vxor.u32 %v473, 2147483648
        %v477 = vmul.f32 %v476, 1.442695
        %v478 = vpow.pop %v477
        %v479 = vadd.f32 %v478, 1.0
        %v480 = vrcp.pop %v479
        %v481 = vmul.f32 1.0, %v480
        %v482 = vld [vmem:[%s6] sm:$0x3]
        %s483 = sld [smem:[#allocation2]]
        %v484 = vld [vmem:[%s5] sm:$0x3]
        %v486 = vsel %vm318, %v484, 0
        %v488 = vsel %vm309, %v305, 0
        %v490 = vsel %vm309, %v307, 0
        %492 = vmatprep.subr.mxu0 %v490
        %493 = vmatpush1.msra.mxu0 %v488
        %494 = vmatprep.subr.mxu0 0.0
        %495 = vmatpush1.msra.mxu0 0.0
        %496 = vmatprep.subr.mxu0 0.0
        %497 = vmatpush1.msra.mxu0 0.0
        %498 = vmatprep.subr.mxu0 0.0
        %499 = vmatpush1.msra.mxu0 0.0
        %500 = vmatprep.subr.mxu0 0.0
        %501 = vmatpush1.msra.mxu0 0.0
        %502 = vmatprep.subr.mxu0 0.0
        %503 = vmatpush1.msra.mxu0 0.0
        %504 = vmatprep.subr.mxu0 0.0
        %505 = vmatpush1.msra.mxu0 0.0
        %506 = vmatprep.subr.mxu0 0.0
        %507 = vmatpush1.msra.mxu0 0.0
        %508 = vmatprep.subr.mxu0 0.0
        %509 = vmatpush1.msra.mxu0 0.0
        %510 = vmatprep.subr.mxu0 0.0
        %511 = vmatpush1.msra.mxu0 0.0
        %512 = vmatprep.subr.mxu0 0.0
        %513 = vmatpush1.msra.mxu0 0.0
        %514 = vmatprep.subr.mxu0 0.0
        %515 = vmatpush1.msra.mxu0 0.0
        %516 = vmatprep.subr.mxu0 0.0
        %517 = vmatpush1.msra.mxu0 0.0
        %518 = vmatprep.subr.mxu0 0.0
        %519 = vmatpush1.msra.mxu0 0.0
        %520 = vmatprep.subr.mxu0 0.0
        %521 = vmatpush1.msra.mxu0 0.0
        %522 = vmatprep.subr.mxu0 0.0
        %523 = vmatpush1.msra.mxu0 0.0
        %524 = vmatprep.subr.mxu0 0.0
        %525 = vmatpush1.msra.mxu0 0.0
        %526 = vmatprep.subr.mxu0 0.0
        %527 = vmatpush1.msra.mxu0 0.0
        %528 = vmatprep.subr.mxu0 0.0
        %529 = vmatpush1.msra.mxu0 0.0
        %530 = vmatprep.subr.mxu0 0.0
        %531 = vmatpush1.msra.mxu0 0.0
        %532 = vmatprep.subr.mxu0 0.0
        %533 = vmatpush1.msra.mxu0 0.0
        %534 = vmatprep.subr.mxu0 0.0
        %535 = vmatpush1.msra.mxu0 0.0
        %536 = vmatprep.subr.mxu0 0.0
        %537 = vmatpush1.msra.mxu0 0.0
        %538 = vmatprep.subr.mxu0 0.0
        %539 = vmatpush1.msra.mxu0 0.0
        %540 = vmatprep.subr.mxu0 0.0
        %541 = vmatpush1.msra.mxu0 0.0
        %542 = vmatprep.subr.mxu0 0.0
        %543 = vmatpush1.msra.mxu0 0.0
        %544 = vmatprep.subr.mxu0 0.0
        %545 = vmatpush1.msra.mxu0 0.0
        %546 = vmatprep.subr.mxu0 0.0
        %547 = vmatpush1.msra.mxu0 0.0
        %548 = vmatprep.subr.mxu0 0.0
        %549 = vmatpush1.msra.mxu0 0.0
        %550 = vmatprep.subr.mxu0 0.0
        %551 = vmatpush1.msra.mxu0 0.0
        %552 = vmatprep.subr.mxu0 0.0
        %553 = vmatpush1.msra.mxu0 0.0
        %554 = vmatprep.subr.mxu0 0.0
        %555 = vmatpush1.msra.mxu0 0.0
        %556 = vmatprep.mubr.f32.mxu0 0.0
        %557 = vmatmul.mubr.f32.gmra.mrb[0].mxu0 %v486
        %v558 = vpop.f32.mrb[0].mxu0
        %v559 = vadd.f32 0.0, %v558
        %v560 = vpop.f32.mrb[0].mxu0
        %v561 = vadd.f32 0.0, %v560
        %562 = vdwg.mxu0
        %v563 = vstv %s483
        %v564 = vadd.f32 %v559, %v563
        %v565 = vadd.f32 %v561, %v563
        %v566 = vxor.u32 %v564, 2147483648
        %v567 = vxor.u32 %v565, 2147483648
        %v568 = vmul.f32 %v566, 1.442695
        %v569 = vpow.pop %v568
        %v570 = vmul.f32 %v567, 1.442695
        %v571 = vpow.pop %v570
        %v572 = vadd.f32 %v569, 1.0
        %v573 = vadd.f32 %v571, 1.0
        %v574 = vrcp.pop %v572
        %v575 = vmul.f32 1.0, %v574
        %v576 = vrcp.pop %v573
        %v577 = vmul.f32 1.0, %v576
        %v579 = vlaneseq
        %v580 = vshrl.u32 %v579, 7
        %v581 = vsub.s32 0, %v580
        %v582 = vrot.slane %v482, %v581
        %v583 = vlaneseq
        %v584 = vshrl.u32 %v583, 7
        %v585 = vsub.s32 1, %v584
        %v586 = vrot.slane %v482, %v585
        %v589 = vadd.f32 %v559, %v582
        %v590 = vadd.f32 %v561, %v586
        %v591 = vxor.u32 %v589, 2147483648
        %v592 = vxor.u32 %v590, 2147483648
        %v593 = vmul.f32 %v591, 1.442695
        %v594 = vpow.pop %v593
        %v595 = vmul.f32 %v592, 1.442695
        %v596 = vpow.pop %v595
        %v597 = vadd.f32 %v594, 1.0
        %v598 = vadd.f32 %v596, 1.0
        %v599 = vrcp.pop %v597
        %v600 = vmul.f32 1.0, %v599
        %v601 = vrcp.pop %v598
        %v602 = vmul.f32 1.0, %v601
        %v605 = vrot.slane %v600, 1
        %v606 = vrot.slane %v602, 1
        %v609 = vadd.f32 %v575, %v605
        %v610 = vadd.f32 %v577, %v606
        %612 = vset.pattern.permute.xlu0 0
        %613 = vperm.xlu0 %612, %v481
        %v614 = vpop.permute.xlu0 %613
        %v616 = vlaneseq
        %v617 = vshrl.u32 %v616, 7
        %v618 = vsub.s32 0, %v617
        %v619 = vrot.slane %v609, %v618
        %v620 = vlaneseq
        %v621 = vshrl.u32 %v620, 7
        %v622 = vsub.s32 0, %v621
        %v623 = vrot.slane %v610, %v622
        %v624 = vadd.f32 %v614, %v619
        %v625 = vadd.f32 %v614, %v623
        %v628 = vcombine.low %v624, %v625
        %v630 = vmul.f32 %v305, %v628
        %631 = vst [vmem:[%s299] sm:$0xff] %v630
        %s632 = sand.u32 %s204, 1
        %s633 = scalar_lea.sflag [#allocation4], %s632
        %s634 = sand.u32 %s204, 1
        %s635 = smul.addr %s634, 8
        %s636 = scalar_lea.vmem [#allocation3], %s635
        // Predicated region
        $region53: #{tpu_custom_call.1} parent=51 // pred_check
          %p637 = pneg %p214
        $region54: #{tpu_custom_call.1} parent=51 // pred_check_branch
          %639 = sbr.rel (%p637) target = $region56
        $region55: #{tpu_custom_call.1} parent=51 // pred_region
          %s641 = ssub.s32 128, 128
          %642 = vsyncadd %s633, %s641
          %s643 = smul.addr %s23, 2
          %s644 = smul.addr %s643, 64
          %s645 = scalar_lea.hbm %s8, %s644
          %s647 = sshll.u32 %s636, 4
          %s648 = int_to_ptr.vmem [resolvable:$true] %s647
          %650 = dma.vmem_to_hbm [thread:$0]  %s648, 128, %s645, %s633
        $region56: #{tpu_custom_call.1} parent=51 // pred_fallthru
          _
      $region52: #{tpu_custom_call.1} parent=5 // pred_fallthru
        _
      %p651 = scmp.le.s32.totalorder 2, %s18
      // Predicated region
      $region57: #{tpu_custom_call.1} parent=5 // pred_check
        %p652 = pneg %p651
      $region58: #{tpu_custom_call.1} parent=5 // pred_check_branch
        %654 = sbr.rel (%p652) target = $region60
      $region59: #{tpu_custom_call.1} parent=5 // pred_region
        %s655 = ssub.s32 %s18, 2
        // Predicated region
        $region61: #{tpu_custom_call.1} parent=59 // pred_check
          %p656 = pneg %p220
        $region62: #{tpu_custom_call.1} parent=59 // pred_check_branch
          %658 = sbr.rel (%p656) target = $region64
        $region63: #{tpu_custom_call.1} parent=59 // pred_region
          %s659 = sand.u32 %s205, 1
          %s660 = scalar_lea.sflag [#allocation4], %s659
          %s661 = sand.u32 %s205, 1
          %s662 = smul.addr %s661, 8
          %s663 = scalar_lea.vmem [#allocation3], %s662
          %664 = dma.done %s660, 128
        $region64: #{tpu_custom_call.1} parent=59 // pred_fallthru
          _
      $region60: #{tpu_custom_call.1} parent=5 // pred_fallthru
        _
    $region6: #{tpu_custom_call.1} parent=1 // loop_footer
      %s22 = sadd.s32 1, %s18
    $region7: #{tpu_custom_call.1} parent=1 // loop_footer_branch
      %17 = sbr.rel target = $region3
    $region8: #{tpu_custom_call.1} parent=1 // loop_exit
      _
    %665 = vsyncpa [#allocation4], 1
    %s666 = scalar_lea.sflag [#allocation4], 1
    %667 = vsyncpa %s666, 1

</llo_original>
